<compile_context>
chip_gen: v7x
topology: tpu7x:2x2x1
jax: 0.10.0
libtpu: 0.0.40
codegen_flags: <defaults>
</compile_context>

<pallas_src>
import functools

import jax
import jax.numpy as jnp
from jax.experimental import pallas as pl
from jax.experimental.pallas import tpu as pltpu


def _round_up(x, m):
    return (x + m - 1) // m * m


def _checker_mask(k, dtype=jnp.float32):
    i = jnp.arange(k)
    return (((i[:, None] + i[None, :]) % 2) == 1).astype(dtype)


def _checker_conv_kernel(x_ref, w_ref, b_ref, o_ref, xg_ref, col_ref, *,
                         H, W, C, anchors, guard):
    """One batch element per grid step. NCHW with H*W flattened on lanes.

    x_ref   : (1, C, H*W)   input image (spatial flattened on the lane axis)
    w_ref   : (N, T*C)      anchor-packed weights (T = 24 anchor taps)
    b_ref   : (N, 1)        combined bias
    o_ref   : (1, N, H*W)   output
    xg_ref  : (C, L)        VMEM scratch: zero-guarded flat input (row halo)
    col_ref : (T*C, H*W)    VMEM scratch: 24-tap im2col matrix
    """
    HW = H * W
    cdtype = col_ref.dtype

    # Zero-guarded copy of the image. `guard` zeros on each side supply the
    # vertical (row) halo for every tap; the centre store is lane-aligned
    # (guard is a multiple of 128).
    xg_ref[...] = jnp.zeros_like(xg_ref)
    xg_ref[:, guard:guard + HW] = x_ref[0]

    # Column-validity masks (depend only on dx). Out-of-range *rows* read the
    # zero guard; out-of-range *columns* would wrap into the neighbouring row
    # of the flattened image and are zeroed here instead.
    col = jax.lax.broadcasted_iota(jnp.int32, (1, HW), 1) % W
    colmask = [((col + dx >= 3) & (col + dx < W + 3)).astype(cdtype)
               for dx in range(7)]

    # Build the 24-tap im2col matrix: rows [t*C, (t+1)*C) hold the (dy, dx) tap
    # patch; spatial (H*W) stays dense on the lane axis.
    base = guard - (3 * W + 3)
    for t, (dy, dx) in enumerate(anchors):
        s = base + dy * W + dx                      # static flat tap offset
        col_ref[t * C:(t + 1) * C, :] = xg_ref[:, s:s + HW] * colmask[dx]

    # Single deep-contraction matmul (depth = 24*C) on the MXU, f32 accumulate.
    acc = jnp.dot(w_ref[...], col_ref[...], preferred_element_type=jnp.float32)
    o_ref[0] = (acc + b_ref[...]).astype(o_ref.dtype)


def checker_context(x_nchw, w3, b3, w5, b5, w7, b7, *,
                    compute_dtype=jnp.float32):
    """Pallas implementation of CheckerContext.forward. x_nchw: (B, C, H, W).

    compute_dtype=jnp.bfloat16 halves HBM/VMEM traffic and doubles MXU rate on
    v6e/v7x (accumulation stays f32); the default f32 keeps the strict 1e-4
    numerical check below.
    """
    B, C, H, W = x_nchw.shape
    N = w3.shape[0]
    K = 7
    HW = H * W

    # Anchor taps of the 7x7 checkerboard frame (i + j odd) -> 24 taps.
    anchors = tuple((dy, dx) for dy in range(K) for dx in range(K)
                    if (dy + dx) % 2 == 1)
    T = len(anchors)

    # --- parameter glue (plain JAX, negligible): embed the three masked convs
    # into one 7x7 frame, then pack ONLY the 24 anchor taps -> (N, 24*C).
    w_comb = jnp.zeros((N, C, K, K), jnp.float32)
    for w in (w3, w5, w7):
        k = w.shape[-1]
        off = (K - k) // 2
        w_comb = w_comb.at[:, :, off:off + k, off:off + k].add(
            w.astype(jnp.float32) * _checker_mask(k))
    w_packed = jnp.stack([w_comb[:, :, dy, dx] for dy, dx in anchors], axis=1)
    w_packed = w_packed.reshape(N, T * C).astype(compute_dtype)   # (N, 24*C)
    b_comb = (b3 + b5 + b7).astype(jnp.float32).reshape(N, 1)

    # NCHW stays NCHW; flattening H*W is free (no transpose / pad HBM passes).
    x_flat = x_nchw.reshape(B, C, HW).astype(compute_dtype)

    guard = _round_up(3 * W + 3, 128)      # lane-aligned zero guard (row halo)
    L = 2 * guard + HW

    kern = functools.partial(_checker_conv_kernel, H=H, W=W, C=C,
                             anchors=anchors, guard=guard)

    # TODO(synk): for production H*W (or v7x's 64 MiB VMEM) tile over H-row
    # strips with a 6-row halo instead of one full frame per grid step.
    out = pl.pallas_call(
        kern,
        out_shape=jax.ShapeDtypeStruct((B, N, HW), jnp.float32),
        grid_spec=pltpu.PrefetchScalarGridSpec(
            num_scalar_prefetch=0,
            grid=(B,),
            in_specs=[
                pl.BlockSpec((1, C, HW), lambda b: (b, 0, 0)),
                # weight / bias are grid-invariant (constant index_map); their
                # double-buffer cost is a few KB so pl.Buffered(1) is skipped.
                pl.BlockSpec((N, T * C), lambda b: (0, 0)),
                pl.BlockSpec((N, 1), lambda b: (0, 0)),
            ],
            out_specs=pl.BlockSpec((1, N, HW), lambda b: (b, 0, 0)),
            scratch_shapes=[
                pltpu.VMEM((C, L), compute_dtype),        # guarded flat input
                pltpu.VMEM((T * C, HW), compute_dtype),   # 24-tap im2col
            ],
        ),
        compiler_params=pltpu.CompilerParams(
            dimension_semantics=("parallel",)),
    )(x_flat, w_packed, b_comb)

    return out.reshape(B, N, H, W)     # free reshape, already NCHW


def _reference(x, w3, b3, w5, b5, w7, b7):
    """Pure-JAX reference of the PyTorch forward (three masked convs, summed)."""
    def conv(w, b, pad):
        k = w.shape[-1]
        y = jax.lax.conv_general_dilated(
            x, w * _checker_mask(k), (1, 1), [(pad, pad), (pad, pad)],
            dimension_numbers=("NCHW", "OIHW", "NCHW"))
        return y + b[None, :, None, None]
    return conv(w3, b3, 1) + conv(w5, b5, 2) + conv(w7, b7, 3)


if __name__ == "__main__":
    B, C, N, H, W = 2, 4, 8, 16, 16

    key = jax.random.PRNGKey(0)
    k = jax.random.split(key, 7)
    x = jax.random.normal(k[0], (B, C, H, W), jnp.float32)
    # deterministic synthetic parameters (Conv2d(C, N, ksize) shapes)
    w3 = 0.10 * jax.random.normal(k[1], (N, C, 3, 3), jnp.float32)
    b3 = 0.10 * jax.random.normal(k[2], (N,), jnp.float32)
    w5 = 0.05 * jax.random.normal(k[3], (N, C, 5, 5), jnp.float32)
    b5 = 0.10 * jax.random.normal(k[4], (N,), jnp.float32)
    w7 = 0.02 * jax.random.normal(k[5], (N, C, 7, 7), jnp.float32)
    b7 = 0.10 * jax.random.normal(k[6], (N,), jnp.float32)

    out = checker_context(x, w3, b3, w5, b5, w7, b7)
    out = jax.block_until_ready(out)
    assert out.shape == (B, N, H, W), out.shape

    ref = _reference(x, w3, b3, w5, b5, w7, b7)
    err = float(jnp.max(jnp.abs(out - ref)))
    if err > 1e-4:
        raise AssertionError(f"Pallas kernel mismatch vs reference, max abs err = {err}")
    print("KERNEL_OK")
</pallas_src>

<mosaic_0001>
module attributes {stable_mosaic.version = 11 : i64} {
  func.func @_checker_conv_kernel(%arg0: i32, %arg1: memref<1x4x256xf32, #tpu.memory_space<vmem>>, %arg2: memref<8x96xf32, #tpu.memory_space<vmem>>, %arg3: memref<8x1xf32, #tpu.memory_space<vmem>>, %arg4: memref<1x8x256xf32, #tpu.memory_space<vmem>>, %arg5: memref<4x512xf32, #tpu.memory_space<vmem>>, %arg6: memref<96x256xf32, #tpu.memory_space<vmem>>) attributes {dimension_semantics = [#tpu.dimension_semantics<parallel>], iteration_bounds = array<i64: 2>, scalar_prefetch = 0 : i64, scratch_operands = 2 : i64, tpu.core_type = #tpu.core_type<tc>, window_params = [{transform_indices = @transform_0, window_bounds = array<i64: 1, 4, 256>}, {pipeline_mode = #tpu.pipeline_mode<synchronous>, transform_indices = @transform_1, window_bounds = array<i64: 8, 96>}, {pipeline_mode = #tpu.pipeline_mode<synchronous>, transform_indices = @transform_2, window_bounds = array<i64: 8, 1>}, {transform_indices = @transform_3, window_bounds = array<i64: 1, 8, 256>}]} {
    %cst = arith.constant 0.000000e+00 : f32
    %0 = vector.broadcast %cst : f32 to vector<4x512xf32>
    %c0 = arith.constant 0 : index
    %c0_0 = arith.constant 0 : index
    %1 = vector.load %arg5[%c0, %c0_0] : memref<4x512xf32, #tpu.memory_space<vmem>>, vector<4x512xf32>
    tpu.vector_store %arg5[%c0, %c0_0], %0 {strides = array<i32>} : memref<4x512xf32, #tpu.memory_space<vmem>>, vector<4x512xf32>,
    %c0_1 = arith.constant 0 : index
    %c0_2 = arith.constant 0 : index
    %c0_3 = arith.constant 0 : index
    %2 = vector.load %arg1[%c0_1, %c0_2, %c0_3] : memref<1x4x256xf32, #tpu.memory_space<vmem>>, vector<1x4x256xf32>
    %3 = vector.shape_cast %2 : vector<1x4x256xf32> to vector<4x256xf32>
    %c0_4 = arith.constant 0 : index
    %c128 = arith.constant 128 : index
    %4 = vector.load %arg5[%c0_4, %c128] : memref<4x512xf32, #tpu.memory_space<vmem>>, vector<4x256xf32>
    tpu.vector_store %arg5[%c0_4, %c128], %3 {strides = array<i32>} : memref<4x512xf32, #tpu.memory_space<vmem>>, vector<4x256xf32>,
    %5 = tpu.iota {dimensions = array<i32: 1>} : vector<1x256xi32>
    %c16_i32 = arith.constant 16 : i32
    %c0_i32 = arith.constant 0 : i32
    %6 = arith.cmpi eq, %c16_i32, %c0_i32 : i32
    %c1_i32 = arith.constant 1 : i32
    %7 = arith.select %6, %c1_i32, %c16_i32 : i32
    %8 = vector.broadcast %7 : i32 to vector<1x256xi32>
    %9 = arith.remsi %5, %8 : vector<1x256xi32>
    %c0_i32_5 = arith.constant 0 : i32
    %10 = vector.broadcast %c0_i32_5 : i32 to vector<1x256xi32>
    %11 = arith.cmpi ne, %9, %10 : vector<1x256xi32>
    %c0_i32_6 = arith.constant 0 : i32
    %12 = vector.broadcast %c0_i32_6 : i32 to vector<1x256xi32>
    %13 = arith.cmpi slt, %9, %12 : vector<1x256xi32>
    %c0_i32_7 = arith.constant 0 : i32
    %14 = arith.cmpi slt, %7, %c0_i32_7 : i32
    %15 = vector.broadcast %14 : i1 to vector<1x256xi1>
    %16 = vector.broadcast %15 : vector<1x256xi1> to vector<1x256xi1>
    %17 = arith.xori %13, %16 : vector<1x256xi1>
    %18 = arith.andi %17, %11 : vector<1x256xi1>
    %19 = vector.broadcast %7 : i32 to vector<1x256xi32>
    %20 = arith.addi %9, %19 : vector<1x256xi32>
    %21 = arith.select %18, %20, %9 : vector<1x256xi1>, vector<1x256xi32>
    %c0_i32_8 = arith.constant 0 : i32
    %22 = vector.broadcast %c0_i32_8 : i32 to vector<1x256xi32>
    %23 = arith.addi %21, %22 : vector<1x256xi32>
    %c3_i32 = arith.constant 3 : i32
    %24 = vector.broadcast %c3_i32 : i32 to vector<1x256xi32>
    %25 = arith.cmpi sge, %23, %24 : vector<1x256xi32>
    %c0_i32_9 = arith.constant 0 : i32
    %26 = vector.broadcast %c0_i32_9 : i32 to vector<1x256xi32>
    %27 = arith.addi %21, %26 : vector<1x256xi32>
    %c19_i32 = arith.constant 19 : i32
    %28 = vector.broadcast %c19_i32 : i32 to vector<1x256xi32>
    %29 = arith.cmpi slt, %27, %28 : vector<1x256xi32>
    %30 = arith.andi %25, %29 : vector<1x256xi1>
    %31 = arith.extui %30 : vector<1x256xi1> to vector<1x256xi32>
    %32 = arith.sitofp %31 : vector<1x256xi32> to vector<1x256xf32>
    %c1_i32_10 = arith.constant 1 : i32
    %33 = vector.broadcast %c1_i32_10 : i32 to vector<1x256xi32>
    %34 = arith.addi %21, %33 : vector<1x256xi32>
    %c3_i32_11 = arith.constant 3 : i32
    %35 = vector.broadcast %c3_i32_11 : i32 to vector<1x256xi32>
    %36 = arith.cmpi sge, %34, %35 : vector<1x256xi32>
    %c1_i32_12 = arith.constant 1 : i32
    %37 = vector.broadcast %c1_i32_12 : i32 to vector<1x256xi32>
    %38 = arith.addi %21, %37 : vector<1x256xi32>
    %c19_i32_13 = arith.constant 19 : i32
    %39 = vector.broadcast %c19_i32_13 : i32 to vector<1x256xi32>
    %40 = arith.cmpi slt, %38, %39 : vector<1x256xi32>
    %41 = arith.andi %36, %40 : vector<1x256xi1>
    %42 = arith.extui %41 : vector<1x256xi1> to vector<1x256xi32>
    %43 = arith.sitofp %42 : vector<1x256xi32> to vector<1x256xf32>
    %c2_i32 = arith.constant 2 : i32
    %44 = vector.broadcast %c2_i32 : i32 to vector<1x256xi32>
    %45 = arith.addi %21, %44 : vector<1x256xi32>
    %c3_i32_14 = arith.constant 3 : i32
    %46 = vector.broadcast %c3_i32_14 : i32 to vector<1x256xi32>
    %47 = arith.cmpi sge, %45, %46 : vector<1x256xi32>
    %c2_i32_15 = arith.constant 2 : i32
    %48 = vector.broadcast %c2_i32_15 : i32 to vector<1x256xi32>
    %49 = arith.addi %21, %48 : vector<1x256xi32>
    %c19_i32_16 = arith.constant 19 : i32
    %50 = vector.broadcast %c19_i32_16 : i32 to vector<1x256xi32>
    %51 = arith.cmpi slt, %49, %50 : vector<1x256xi32>
    %52 = arith.andi %47, %51 : vector<1x256xi1>
    %53 = arith.extui %52 : vector<1x256xi1> to vector<1x256xi32>
    %54 = arith.sitofp %53 : vector<1x256xi32> to vector<1x256xf32>
    %c3_i32_17 = arith.constant 3 : i32
    %55 = vector.broadcast %c3_i32_17 : i32 to vector<1x256xi32>
    %56 = arith.addi %21, %55 : vector<1x256xi32>
    %c3_i32_18 = arith.constant 3 : i32
    %57 = vector.broadcast %c3_i32_18 : i32 to vector<1x256xi32>
    %58 = arith.cmpi sge, %56, %57 : vector<1x256xi32>
    %c3_i32_19 = arith.constant 3 : i32
    %59 = vector.broadcast %c3_i32_19 : i32 to vector<1x256xi32>
    %60 = arith.addi %21, %59 : vector<1x256xi32>
    %c19_i32_20 = arith.constant 19 : i32
    %61 = vector.broadcast %c19_i32_20 : i32 to vector<1x256xi32>
    %62 = arith.cmpi slt, %60, %61 : vector<1x256xi32>
    %63 = arith.andi %58, %62 : vector<1x256xi1>
    %64 = arith.extui %63 : vector<1x256xi1> to vector<1x256xi32>
    %65 = arith.sitofp %64 : vector<1x256xi32> to vector<1x256xf32>
    %c4_i32 = arith.constant 4 : i32
    %66 = vector.broadcast %c4_i32 : i32 to vector<1x256xi32>
    %67 = arith.addi %21, %66 : vector<1x256xi32>
    %c3_i32_21 = arith.constant 3 : i32
    %68 = vector.broadcast %c3_i32_21 : i32 to vector<1x256xi32>
    %69 = arith.cmpi sge, %67, %68 : vector<1x256xi32>
    %c4_i32_22 = arith.constant 4 : i32
    %70 = vector.broadcast %c4_i32_22 : i32 to vector<1x256xi32>
    %71 = arith.addi %21, %70 : vector<1x256xi32>
    %c19_i32_23 = arith.constant 19 : i32
    %72 = vector.broadcast %c19_i32_23 : i32 to vector<1x256xi32>
    %73 = arith.cmpi slt, %71, %72 : vector<1x256xi32>
    %74 = arith.andi %69, %73 : vector<1x256xi1>
    %75 = arith.extui %74 : vector<1x256xi1> to vector<1x256xi32>
    %76 = arith.sitofp %75 : vector<1x256xi32> to vector<1x256xf32>
    %c5_i32 = arith.constant 5 : i32
    %77 = vector.broadcast %c5_i32 : i32 to vector<1x256xi32>
    %78 = arith.addi %21, %77 : vector<1x256xi32>
    %c3_i32_24 = arith.constant 3 : i32
    %79 = vector.broadcast %c3_i32_24 : i32 to vector<1x256xi32>
    %80 = arith.cmpi sge, %78, %79 : vector<1x256xi32>
    %c5_i32_25 = arith.constant 5 : i32
    %81 = vector.broadcast %c5_i32_25 : i32 to vector<1x256xi32>
    %82 = arith.addi %21, %81 : vector<1x256xi32>
    %c19_i32_26 = arith.constant 19 : i32
    %83 = vector.broadcast %c19_i32_26 : i32 to vector<1x256xi32>
    %84 = arith.cmpi slt, %82, %83 : vector<1x256xi32>
    %85 = arith.andi %80, %84 : vector<1x256xi1>
    %86 = arith.extui %85 : vector<1x256xi1> to vector<1x256xi32>
    %87 = arith.sitofp %86 : vector<1x256xi32> to vector<1x256xf32>
    %c6_i32 = arith.constant 6 : i32
    %88 = vector.broadcast %c6_i32 : i32 to vector<1x256xi32>
    %89 = arith.addi %21, %88 : vector<1x256xi32>
    %c3_i32_27 = arith.constant 3 : i32
    %90 = vector.broadcast %c3_i32_27 : i32 to vector<1x256xi32>
    %91 = arith.cmpi sge, %89, %90 : vector<1x256xi32>
    %c6_i32_28 = arith.constant 6 : i32
    %92 = vector.broadcast %c6_i32_28 : i32 to vector<1x256xi32>
    %93 = arith.addi %21, %92 : vector<1x256xi32>
    %c19_i32_29 = arith.constant 19 : i32
    %94 = vector.broadcast %c19_i32_29 : i32 to vector<1x256xi32>
    %95 = arith.cmpi slt, %93, %94 : vector<1x256xi32>
    %96 = arith.andi %91, %95 : vector<1x256xi1>
    %97 = arith.extui %96 : vector<1x256xi1> to vector<1x256xi32>
    %98 = arith.sitofp %97 : vector<1x256xi32> to vector<1x256xf32>
    %c0_30 = arith.constant 0 : index
    %c78 = arith.constant 78 : index
    %99 = vector.load %arg5[%c0_30, %c78] : memref<4x512xf32, #tpu.memory_space<vmem>>, vector<4x256xf32>
    %100 = vector.broadcast %43 : vector<1x256xf32> to vector<4x256xf32>
    %101 = arith.mulf %99, %100 : vector<4x256xf32>
    %c0_31 = arith.constant 0 : index
    %c0_32 = arith.constant 0 : index
    %102 = vector.load %arg6[%c0_31, %c0_32] : memref<96x256xf32, #tpu.memory_space<vmem>>, vector<4x256xf32>
    tpu.vector_store %arg6[%c0_31, %c0_32], %101 {strides = array<i32>} : memref<96x256xf32, #tpu.memory_space<vmem>>, vector<4x256xf32>,
    %c0_33 = arith.constant 0 : index
    %c80 = arith.constant 80 : index
    %103 = vector.load %arg5[%c0_33, %c80] : memref<4x512xf32, #tpu.memory_space<vmem>>, vector<4x256xf32>
    %104 = vector.broadcast %65 : vector<1x256xf32> to vector<4x256xf32>
    %105 = arith.mulf %103, %104 : vector<4x256xf32>
    %c4 = arith.constant 4 : index
    %c0_34 = arith.constant 0 : index
    %106 = vector.load %arg6[%c4, %c0_34] : memref<96x256xf32, #tpu.memory_space<vmem>>, vector<4x256xf32>
    tpu.vector_store %arg6[%c4, %c0_34], %105 {strides = array<i32>} : memref<96x256xf32, #tpu.memory_space<vmem>>, vector<4x256xf32>,
    %c0_35 = arith.constant 0 : index
    %c82 = arith.constant 82 : index
    %107 = vector.load %arg5[%c0_35, %c82] : memref<4x512xf32, #tpu.memory_space<vmem>>, vector<4x256xf32>
    %108 = vector.broadcast %87 : vector<1x256xf32> to vector<4x256xf32>
    %109 = arith.mulf %107, %108 : vector<4x256xf32>
    %c8 = arith.constant 8 : index
    %c0_36 = arith.constant 0 : index
    %110 = vector.load %arg6[%c8, %c0_36] : memref<96x256xf32, #tpu.memory_space<vmem>>, vector<4x256xf32>
    tpu.vector_store %arg6[%c8, %c0_36], %109 {strides = array<i32>} : memref<96x256xf32, #tpu.memory_space<vmem>>, vector<4x256xf32>,
    %c0_37 = arith.constant 0 : index
    %c93 = arith.constant 93 : index
    %111 = vector.load %arg5[%c0_37, %c93] : memref<4x512xf32, #tpu.memory_space<vmem>>, vector<4x256xf32>
    %112 = vector.broadcast %32 : vector<1x256xf32> to vector<4x256xf32>
    %113 = arith.mulf %111, %112 : vector<4x256xf32>
    %c12 = arith.constant 12 : index
    %c0_38 = arith.constant 0 : index
    %114 = vector.load %arg6[%c12, %c0_38] : memref<96x256xf32, #tpu.memory_space<vmem>>, vector<4x256xf32>
    tpu.vector_store %arg6[%c12, %c0_38], %113 {strides = array<i32>} : memref<96x256xf32, #tpu.memory_space<vmem>>, vector<4x256xf32>,
    %c0_39 = arith.constant 0 : index
    %c95 = arith.constant 95 : index
    %115 = vector.load %arg5[%c0_39, %c95] : memref<4x512xf32, #tpu.memory_space<vmem>>, vector<4x256xf32>
    %116 = vector.broadcast %54 : vector<1x256xf32> to vector<4x256xf32>
    %117 = arith.mulf %115, %116 : vector<4x256xf32>
    %c16 = arith.constant 16 : index
    %c0_40 = arith.constant 0 : index
    %118 = vector.load %arg6[%c16, %c0_40] : memref<96x256xf32, #tpu.memory_space<vmem>>, vector<4x256xf32>
    tpu.vector_store %arg6[%c16, %c0_40], %117 {strides = array<i32>} : memref<96x256xf32, #tpu.memory_space<vmem>>, vector<4x256xf32>,
    %c0_41 = arith.constant 0 : index
    %c97 = arith.constant 97 : index
    %119 = vector.load %arg5[%c0_41, %c97] : memref<4x512xf32, #tpu.memory_space<vmem>>, vector<4x256xf32>
    %120 = vector.broadcast %76 : vector<1x256xf32> to vector<4x256xf32>
    %121 = arith.mulf %119, %120 : vector<4x256xf32>
    %c20 = arith.constant 20 : index
    %c0_42 = arith.constant 0 : index
    %122 = vector.load %arg6[%c20, %c0_42] : memref<96x256xf32, #tpu.memory_space<vmem>>, vector<4x256xf32>
    tpu.vector_store %arg6[%c20, %c0_42], %121 {strides = array<i32>} : memref<96x256xf32, #tpu.memory_space<vmem>>, vector<4x256xf32>,
    %c0_43 = arith.constant 0 : index
    %c99 = arith.constant 99 : index
    %123 = vector.load %arg5[%c0_43, %c99] : memref<4x512xf32, #tpu.memory_space<vmem>>, vector<4x256xf32>
    %124 = vector.broadcast %98 : vector<1x256xf32> to vector<4x256xf32>
    %125 = arith.mulf %123, %124 : vector<4x256xf32>
    %c24 = arith.constant 24 : index
    %c0_44 = arith.constant 0 : index
    %126 = vector.load %arg6[%c24, %c0_44] : memref<96x256xf32, #tpu.memory_space<vmem>>, vector<4x256xf32>
    tpu.vector_store %arg6[%c24, %c0_44], %125 {strides = array<i32>} : memref<96x256xf32, #tpu.memory_space<vmem>>, vector<4x256xf32>,
    %c0_45 = arith.constant 0 : index
    %c110 = arith.constant 110 : index
    %127 = vector.load %arg5[%c0_45, %c110] : memref<4x512xf32, #tpu.memory_space<vmem>>, vector<4x256xf32>
    %128 = vector.broadcast %43 : vector<1x256xf32> to vector<4x256xf32>
    %129 = arith.mulf %127, %128 : vector<4x256xf32>
    %c28 = arith.constant 28 : index
    %c0_46 = arith.constant 0 : index
    %130 = vector.load %arg6[%c28, %c0_46] : memref<96x256xf32, #tpu.memory_space<vmem>>, vector<4x256xf32>
    tpu.vector_store %arg6[%c28, %c0_46], %129 {strides = array<i32>} : memref<96x256xf32, #tpu.memory_space<vmem>>, vector<4x256xf32>,
    %c0_47 = arith.constant 0 : index
    %c112 = arith.constant 112 : index
    %131 = vector.load %arg5[%c0_47, %c112] : memref<4x512xf32, #tpu.memory_space<vmem>>, vector<4x256xf32>
    %132 = vector.broadcast %65 : vector<1x256xf32> to vector<4x256xf32>
    %133 = arith.mulf %131, %132 : vector<4x256xf32>
    %c32 = arith.constant 32 : index
    %c0_48 = arith.constant 0 : index
    %134 = vector.load %arg6[%c32, %c0_48] : memref<96x256xf32, #tpu.memory_space<vmem>>, vector<4x256xf32>
    tpu.vector_store %arg6[%c32, %c0_48], %133 {strides = array<i32>} : memref<96x256xf32, #tpu.memory_space<vmem>>, vector<4x256xf32>,
    %c0_49 = arith.constant 0 : index
    %c114 = arith.constant 114 : index
    %135 = vector.load %arg5[%c0_49, %c114] : memref<4x512xf32, #tpu.memory_space<vmem>>, vector<4x256xf32>
    %136 = vector.broadcast %87 : vector<1x256xf32> to vector<4x256xf32>
    %137 = arith.mulf %135, %136 : vector<4x256xf32>
    %c36 = arith.constant 36 : index
    %c0_50 = arith.constant 0 : index
    %138 = vector.load %arg6[%c36, %c0_50] : memref<96x256xf32, #tpu.memory_space<vmem>>, vector<4x256xf32>
    tpu.vector_store %arg6[%c36, %c0_50], %137 {strides = array<i32>} : memref<96x256xf32, #tpu.memory_space<vmem>>, vector<4x256xf32>,
    %c0_51 = arith.constant 0 : index
    %c125 = arith.constant 125 : index
    %139 = vector.load %arg5[%c0_51, %c125] : memref<4x512xf32, #tpu.memory_space<vmem>>, vector<4x256xf32>
    %140 = vector.broadcast %32 : vector<1x256xf32> to vector<4x256xf32>
    %141 = arith.mulf %139, %140 : vector<4x256xf32>
    %c40 = arith.constant 40 : index
    %c0_52 = arith.constant 0 : index
    %142 = vector.load %arg6[%c40, %c0_52] : memref<96x256xf32, #tpu.memory_space<vmem>>, vector<4x256xf32>
    tpu.vector_store %arg6[%c40, %c0_52], %141 {strides = array<i32>} : memref<96x256xf32, #tpu.memory_space<vmem>>, vector<4x256xf32>,
    %c0_53 = arith.constant 0 : index
    %c127 = arith.constant 127 : index
    %143 = vector.load %arg5[%c0_53, %c127] : memref<4x512xf32, #tpu.memory_space<vmem>>, vector<4x256xf32>
    %144 = vector.broadcast %54 : vector<1x256xf32> to vector<4x256xf32>
    %145 = arith.mulf %143, %144 : vector<4x256xf32>
    %c44 = arith.constant 44 : index
    %c0_54 = arith.constant 0 : index
    %146 = vector.load %arg6[%c44, %c0_54] : memref<96x256xf32, #tpu.memory_space<vmem>>, vector<4x256xf32>
    tpu.vector_store %arg6[%c44, %c0_54], %145 {strides = array<i32>} : memref<96x256xf32, #tpu.memory_space<vmem>>, vector<4x256xf32>,
    %c0_55 = arith.constant 0 : index
    %c129 = arith.constant 129 : index
    %147 = vector.load %arg5[%c0_55, %c129] : memref<4x512xf32, #tpu.memory_space<vmem>>, vector<4x256xf32>
    %148 = vector.broadcast %76 : vector<1x256xf32> to vector<4x256xf32>
    %149 = arith.mulf %147, %148 : vector<4x256xf32>
    %c48 = arith.constant 48 : index
    %c0_56 = arith.constant 0 : index
    %150 = vector.load %arg6[%c48, %c0_56] : memref<96x256xf32, #tpu.memory_space<vmem>>, vector<4x256xf32>
    tpu.vector_store %arg6[%c48, %c0_56], %149 {strides = array<i32>} : memref<96x256xf32, #tpu.memory_space<vmem>>, vector<4x256xf32>,
    %c0_57 = arith.constant 0 : index
    %c131 = arith.constant 131 : index
    %151 = vector.load %arg5[%c0_57, %c131] : memref<4x512xf32, #tpu.memory_space<vmem>>, vector<4x256xf32>
    %152 = vector.broadcast %98 : vector<1x256xf32> to vector<4x256xf32>
    %153 = arith.mulf %151, %152 : vector<4x256xf32>
    %c52 = arith.constant 52 : index
    %c0_58 = arith.constant 0 : index
    %154 = vector.load %arg6[%c52, %c0_58] : memref<96x256xf32, #tpu.memory_space<vmem>>, vector<4x256xf32>
    tpu.vector_store %arg6[%c52, %c0_58], %153 {strides = array<i32>} : memref<96x256xf32, #tpu.memory_space<vmem>>, vector<4x256xf32>,
    %c0_59 = arith.constant 0 : index
    %c142 = arith.constant 142 : index
    %155 = vector.load %arg5[%c0_59, %c142] : memref<4x512xf32, #tpu.memory_space<vmem>>, vector<4x256xf32>
    %156 = vector.broadcast %43 : vector<1x256xf32> to vector<4x256xf32>
    %157 = arith.mulf %155, %156 : vector<4x256xf32>
    %c56 = arith.constant 56 : index
    %c0_60 = arith.constant 0 : index
    %158 = vector.load %arg6[%c56, %c0_60] : memref<96x256xf32, #tpu.memory_space<vmem>>, vector<4x256xf32>
    tpu.vector_store %arg6[%c56, %c0_60], %157 {strides = array<i32>} : memref<96x256xf32, #tpu.memory_space<vmem>>, vector<4x256xf32>,
    %c0_61 = arith.constant 0 : index
    %c144 = arith.constant 144 : index
    %159 = vector.load %arg5[%c0_61, %c144] : memref<4x512xf32, #tpu.memory_space<vmem>>, vector<4x256xf32>
    %160 = vector.broadcast %65 : vector<1x256xf32> to vector<4x256xf32>
    %161 = arith.mulf %159, %160 : vector<4x256xf32>
    %c60 = arith.constant 60 : index
    %c0_62 = arith.constant 0 : index
    %162 = vector.load %arg6[%c60, %c0_62] : memref<96x256xf32, #tpu.memory_space<vmem>>, vector<4x256xf32>
    tpu.vector_store %arg6[%c60, %c0_62], %161 {strides = array<i32>} : memref<96x256xf32, #tpu.memory_space<vmem>>, vector<4x256xf32>,
    %c0_63 = arith.constant 0 : index
    %c146 = arith.constant 146 : index
    %163 = vector.load %arg5[%c0_63, %c146] : memref<4x512xf32, #tpu.memory_space<vmem>>, vector<4x256xf32>
    %164 = vector.broadcast %87 : vector<1x256xf32> to vector<4x256xf32>
    %165 = arith.mulf %163, %164 : vector<4x256xf32>
    %c64 = arith.constant 64 : index
    %c0_64 = arith.constant 0 : index
    %166 = vector.load %arg6[%c64, %c0_64] : memref<96x256xf32, #tpu.memory_space<vmem>>, vector<4x256xf32>
    tpu.vector_store %arg6[%c64, %c0_64], %165 {strides = array<i32>} : memref<96x256xf32, #tpu.memory_space<vmem>>, vector<4x256xf32>,
    %c0_65 = arith.constant 0 : index
    %c157 = arith.constant 157 : index
    %167 = vector.load %arg5[%c0_65, %c157] : memref<4x512xf32, #tpu.memory_space<vmem>>, vector<4x256xf32>
    %168 = vector.broadcast %32 : vector<1x256xf32> to vector<4x256xf32>
    %169 = arith.mulf %167, %168 : vector<4x256xf32>
    %c68 = arith.constant 68 : index
    %c0_66 = arith.constant 0 : index
    %170 = vector.load %arg6[%c68, %c0_66] : memref<96x256xf32, #tpu.memory_space<vmem>>, vector<4x256xf32>
    tpu.vector_store %arg6[%c68, %c0_66], %169 {strides = array<i32>} : memref<96x256xf32, #tpu.memory_space<vmem>>, vector<4x256xf32>,
    %c0_67 = arith.constant 0 : index
    %c159 = arith.constant 159 : index
    %171 = vector.load %arg5[%c0_67, %c159] : memref<4x512xf32, #tpu.memory_space<vmem>>, vector<4x256xf32>
    %172 = vector.broadcast %54 : vector<1x256xf32> to vector<4x256xf32>
    %173 = arith.mulf %171, %172 : vector<4x256xf32>
    %c72 = arith.constant 72 : index
    %c0_68 = arith.constant 0 : index
    %174 = vector.load %arg6[%c72, %c0_68] : memref<96x256xf32, #tpu.memory_space<vmem>>, vector<4x256xf32>
    tpu.vector_store %arg6[%c72, %c0_68], %173 {strides = array<i32>} : memref<96x256xf32, #tpu.memory_space<vmem>>, vector<4x256xf32>,
    %c0_69 = arith.constant 0 : index
    %c161 = arith.constant 161 : index
    %175 = vector.load %arg5[%c0_69, %c161] : memref<4x512xf32, #tpu.memory_space<vmem>>, vector<4x256xf32>
    %176 = vector.broadcast %76 : vector<1x256xf32> to vector<4x256xf32>
    %177 = arith.mulf %175, %176 : vector<4x256xf32>
    %c76 = arith.constant 76 : index
    %c0_70 = arith.constant 0 : index
    %178 = vector.load %arg6[%c76, %c0_70] : memref<96x256xf32, #tpu.memory_space<vmem>>, vector<4x256xf32>
    tpu.vector_store %arg6[%c76, %c0_70], %177 {strides = array<i32>} : memref<96x256xf32, #tpu.memory_space<vmem>>, vector<4x256xf32>,
    %c0_71 = arith.constant 0 : index
    %c163 = arith.constant 163 : index
    %179 = vector.load %arg5[%c0_71, %c163] : memref<4x512xf32, #tpu.memory_space<vmem>>, vector<4x256xf32>
    %180 = vector.broadcast %98 : vector<1x256xf32> to vector<4x256xf32>
    %181 = arith.mulf %179, %180 : vector<4x256xf32>
    %c80_72 = arith.constant 80 : index
    %c0_73 = arith.constant 0 : index
    %182 = vector.load %arg6[%c80_72, %c0_73] : memref<96x256xf32, #tpu.memory_space<vmem>>, vector<4x256xf32>
    tpu.vector_store %arg6[%c80_72, %c0_73], %181 {strides = array<i32>} : memref<96x256xf32, #tpu.memory_space<vmem>>, vector<4x256xf32>,
    %c0_74 = arith.constant 0 : index
    %c174 = arith.constant 174 : index
    %183 = vector.load %arg5[%c0_74, %c174] : memref<4x512xf32, #tpu.memory_space<vmem>>, vector<4x256xf32>
    %184 = vector.broadcast %43 : vector<1x256xf32> to vector<4x256xf32>
    %185 = arith.mulf %183, %184 : vector<4x256xf32>
    %c84 = arith.constant 84 : index
    %c0_75 = arith.constant 0 : index
    %186 = vector.load %arg6[%c84, %c0_75] : memref<96x256xf32, #tpu.memory_space<vmem>>, vector<4x256xf32>
    tpu.vector_store %arg6[%c84, %c0_75], %185 {strides = array<i32>} : memref<96x256xf32, #tpu.memory_space<vmem>>, vector<4x256xf32>,
    %c0_76 = arith.constant 0 : index
    %c176 = arith.constant 176 : index
    %187 = vector.load %arg5[%c0_76, %c176] : memref<4x512xf32, #tpu.memory_space<vmem>>, vector<4x256xf32>
    %188 = vector.broadcast %65 : vector<1x256xf32> to vector<4x256xf32>
    %189 = arith.mulf %187, %188 : vector<4x256xf32>
    %c88 = arith.constant 88 : index
    %c0_77 = arith.constant 0 : index
    %190 = vector.load %arg6[%c88, %c0_77] : memref<96x256xf32, #tpu.memory_space<vmem>>, vector<4x256xf32>
    tpu.vector_store %arg6[%c88, %c0_77], %189 {strides = array<i32>} : memref<96x256xf32, #tpu.memory_space<vmem>>, vector<4x256xf32>,
    %c0_78 = arith.constant 0 : index
    %c178 = arith.constant 178 : index
    %191 = vector.load %arg5[%c0_78, %c178] : memref<4x512xf32, #tpu.memory_space<vmem>>, vector<4x256xf32>
    %192 = vector.broadcast %87 : vector<1x256xf32> to vector<4x256xf32>
    %193 = arith.mulf %191, %192 : vector<4x256xf32>
    %c92 = arith.constant 92 : index
    %c0_79 = arith.constant 0 : index
    %194 = vector.load %arg6[%c92, %c0_79] : memref<96x256xf32, #tpu.memory_space<vmem>>, vector<4x256xf32>
    tpu.vector_store %arg6[%c92, %c0_79], %193 {strides = array<i32>} : memref<96x256xf32, #tpu.memory_space<vmem>>, vector<4x256xf32>,
    %c0_80 = arith.constant 0 : index
    %c0_81 = arith.constant 0 : index
    %195 = vector.load %arg2[%c0_80, %c0_81] : memref<8x96xf32, #tpu.memory_space<vmem>>, vector<8x96xf32>
    %c0_82 = arith.constant 0 : index
    %c0_83 = arith.constant 0 : index
    %196 = vector.load %arg6[%c0_82, %c0_83] : memref<96x256xf32, #tpu.memory_space<vmem>>, vector<96x256xf32>
    %cst_84 = arith.constant dense<0.000000e+00> : vector<8x256xf32>
    %197 = tpu.matmul %195, %196, %cst_84 {dimension_numbers = #tpu.dot_dimension_numbers<[1], [0], [0], [1], [0, 0, 1, 1], [], []>} : vector<8x96xf32>, vector<96x256xf32>, vector<8x256xf32> -> vector<8x256xf32>
    %c0_85 = arith.constant 0 : index
    %c0_86 = arith.constant 0 : index
    %198 = vector.load %arg3[%c0_85, %c0_86] : memref<8x1xf32, #tpu.memory_space<vmem>>, vector<8x1xf32>
    %199 = vector.broadcast %198 : vector<8x1xf32> to vector<8x256xf32>
    %200 = arith.addf %197, %199 : vector<8x256xf32>
    %c0_87 = arith.constant 0 : index
    %c0_88 = arith.constant 0 : index
    %c0_89 = arith.constant 0 : index
    %201 = vector.load %arg4[%c0_87, %c0_88, %c0_89] : memref<1x8x256xf32, #tpu.memory_space<vmem>>, vector<1x8x256xf32>
    %202 = vector.shape_cast %201 : vector<1x8x256xf32> to vector<8x256xf32>
    %203 = vector.shape_cast %200 : vector<8x256xf32> to vector<1x8x256xf32>
    tpu.vector_store %arg4[%c0_87, %c0_88, %c0_89], %203 {strides = array<i32>} : memref<1x8x256xf32, #tpu.memory_space<vmem>>, vector<1x8x256xf32>,
    return
  }
  func.func @transform_0(%arg0: i32) -> (i32, i32, i32) {
    %c0_i32 = arith.constant 0 : i32
    %c0_i32_0 = arith.constant 0 : i32
    %c0_i32_1 = arith.constant 0 : i32
    return %arg0, %c0_i32, %c0_i32_0 : i32, i32, i32
  }
  func.func @transform_1(%arg0: i32) -> (i32, i32) {
    %c0_i32 = arith.constant 0 : i32
    %c0_i32_0 = arith.constant 0 : i32
    %c0_i32_1 = arith.constant 0 : i32
    return %c0_i32, %c0_i32_0 : i32, i32
  }
  func.func @transform_2(%arg0: i32) -> (i32, i32) {
    %c0_i32 = arith.constant 0 : i32
    %c0_i32_0 = arith.constant 0 : i32
    %c0_i32_1 = arith.constant 0 : i32
    return %c0_i32, %c0_i32_0 : i32, i32
  }
  func.func @transform_3(%arg0: i32) -> (i32, i32, i32) {
    %c0_i32 = arith.constant 0 : i32
    %c0_i32_0 = arith.constant 0 : i32
    %c0_i32_1 = arith.constant 0 : i32
    return %arg0, %c0_i32, %c0_i32_0 : i32, i32, i32
  }
}

</mosaic_0001>

<llo_original>
// kernel: tpu_custom_call.1
$region0: #{tpu_custom_call.1}
  #allocation0 [shape = 'u32[]', space=smem, size = 0x4, offset = 0x4, fixed_abs, tag = 'smem constant byte address 0x4 - core index']
  #allocation1 [shape = 'u32[144,128]{1,0:T(1,128)}', space=vmem, size = 0x12000, scoped, tag = 'internal scratch']
  #allocation2 [shape = 'f32[4,512]{1,0:T(4,128)}', space=vmem, size = 0x2000, scoped, tag = 'scratch operand']
  #allocation3 [shape = 'f32[96,256]{1,0:T(8,128)}', space=vmem, size = 0x18000, scoped, tag = 'scratch operand']
  %s0 = inlined_call_operand.hbm [shape: f32[2,4,256], index: 0, kind: input, shape index: {}]
  %s1 = inlined_call_operand.vmem [shape: f32[8,96], index: 1, kind: input, shape index: {}]
  %s2 = inlined_call_operand.vmem [shape: f32[8,1], index: 2, kind: input, shape index: {}]
  %s3 = inlined_call_operand.hbm [shape: f32[2,8,256], index: 3, kind: output, shape index: {}]
  %s4 = sld [smem:[#allocation0]]
  $region49: #{tpu_custom_call.1} parent=0
    _
  %s6 = ssub.s32 1, %s4
  %s7 = scalar_select 0, %s6, %s4
  $region1: #{tpu_custom_call.1} parent=0
    #allocation4 [shape = 'u8[8192]{0}', space=vmem, size = 0x2000, scoped, tag = 'input window, operand 0']
    #allocation5 [shape = 's32[2]{0}', space=sflag, size = 0x8, scoped, tag = 'scoped memory for tpu_custom_call.1']
    #allocation6 [shape = 's32[2]{0}', space=sflag, size = 0x8, scoped, tag = 'scoped memory for tpu_custom_call.1']
    #allocation7 [shape = 'u8[16384]{0}', space=vmem, size = 0x4000, scoped, tag = 'output window, operand 0']
    %8 = vsyncpa [#allocation5], 0
    %s9 = scalar_lea.sflag [#allocation5], 1
    %10 = vsyncpa %s9, 0
    %11 = vsyncpa [#allocation6], 0
    %s12 = scalar_lea.sflag [#allocation6], 1
    %13 = vsyncpa %s12, 0
    loop: start=0, step=1, limit=4
    $region2: #{tpu_custom_call.1} parent=1 // loop_pre_header
      _
    $region3: #{tpu_custom_call.1} parent=1 // loop_header
      %s15 = sphi 0, %s19
      %p16 = scmp.ge.s32.totalorder %s15, 4
      %s25 = sphi 0, %s27
      %s28 = sphi 0, %s25
      %s29 = sphi 0, %s28
      %s45 = sphi 0, %s29
      %s49 = sphi 0, %s49
      %s51 = sphi 0, %s49
      %s52 = sphi 0, %s51
      %s66 = sphi 0, %s52
      %s70 = sphi 0, %s70
      %s72 = sphi 0, %s70
      %s73 = sphi 0, %s72
      %s87 = sphi 0, %s73
      %s93 = sphi 0, %s95
      %s96 = sphi 0, %s93
      %s97 = sphi 0, %s96
      %s113 = sphi 0, %s97
    $region4: #{tpu_custom_call.1} parent=1 // loop_header_branch
      %18 = sbr.rel (%p16) target = $region8
    $region5: #{tpu_custom_call.1} parent=1 // loop_body
      %s20 = ssub.s32 %s15, 1
      %s21 = ssub.s32 %s15, 2
      %s22 = sadd.s32 %s15, 1
      %s23 = ssub.s32 %s15, %s22
      %p24 = scmp.eq.s32.totalorder %s23, 0
      %s26 = sadd.s32 %s25, 1
      %s27 = scalar_select %p24, %s25, %s26
      %p30 = pneg %p24
      %p31 = scmp.eq.s32.totalorder %s15, 1
      %p32 = por %p30, %p31
      %p33 = scmp.ne.s32.totalorder %s25, %s28
      %p34 = scmp.eq.s32.totalorder %s15, 0
      %p35 = por %p33, %p34
      %p36 = scmp.ne.s32.totalorder %s25, %s28
      %p37 = scmp.eq.s32.totalorder %s20, 1
      %p38 = por %p36, %p37
      %p39 = scmp.ne.s32.totalorder %s28, %s29
      %p40 = scmp.eq.s32.totalorder %s20, 0
      %p41 = por %p39, %p40
      %p42 = scmp.ne.s32.totalorder %s28, %s29
      %p43 = scmp.eq.s32.totalorder %s21, 1
      %p44 = por %p42, %p43
      %p46 = scmp.ne.s32.totalorder %s29, %s45
      %p47 = scmp.eq.s32.totalorder %s21, 0
      %p48 = por %p46, %p47
      %s50 = sadd.s32 %s49, 1
      %p53 = scmp.eq.s32.totalorder %s15, 1
      %p54 = scmp.ne.s32.totalorder %s49, %s51
      %p55 = scmp.eq.s32.totalorder %s15, 0
      %p56 = por %p54, %p55
      %p57 = scmp.ne.s32.totalorder %s49, %s51
      %p58 = scmp.eq.s32.totalorder %s20, 1
      %p59 = por %p57, %p58
      %p60 = scmp.ne.s32.totalorder %s51, %s52
      %p61 = scmp.eq.s32.totalorder %s20, 0
      %p62 = por %p60, %p61
      %p63 = scmp.ne.s32.totalorder %s51, %s52
      %p64 = scmp.eq.s32.totalorder %s21, 1
      %p65 = por %p63, %p64
      %p67 = scmp.ne.s32.totalorder %s52, %s66
      %p68 = scmp.eq.s32.totalorder %s21, 0
      %p69 = por %p67, %p68
      %s71 = sadd.s32 %s70, 1
      %p74 = scmp.eq.s32.totalorder %s15, 1
      %p75 = scmp.ne.s32.totalorder %s70, %s72
      %p76 = scmp.eq.s32.totalorder %s15, 0
      %p77 = por %p75, %p76
      %p78 = scmp.ne.s32.totalorder %s70, %s72
      %p79 = scmp.eq.s32.totalorder %s20, 1
      %p80 = por %p78, %p79
      %p81 = scmp.ne.s32.totalorder %s72, %s73
      %p82 = scmp.eq.s32.totalorder %s20, 0
      %p83 = por %p81, %p82
      %p84 = scmp.ne.s32.totalorder %s72, %s73
      %p85 = scmp.eq.s32.totalorder %s21, 1
      %p86 = por %p84, %p85
      %p88 = scmp.ne.s32.totalorder %s73, %s87
      %p89 = scmp.eq.s32.totalorder %s21, 0
      %p90 = por %p88, %p89
      %s91 = ssub.s32 %s15, %s22
      %p92 = scmp.eq.s32.totalorder %s91, 0
      %s94 = sadd.s32 %s93, 1
      %s95 = scalar_select %p92, %s93, %s94
      %p98 = pneg %p92
      %p99 = scmp.eq.s32.totalorder %s15, 1
      %p100 = por %p98, %p99
      %p101 = scmp.ne.s32.totalorder %s93, %s96
      %p102 = scmp.eq.s32.totalorder %s15, 0
      %p103 = por %p101, %p102
      %p104 = scmp.ne.s32.totalorder %s93, %s96
      %p105 = scmp.eq.s32.totalorder %s20, 1
      %p106 = por %p104, %p105
      %p107 = scmp.ne.s32.totalorder %s96, %s97
      %p108 = scmp.eq.s32.totalorder %s20, 0
      %p109 = por %p107, %p108
      %p110 = scmp.ne.s32.totalorder %s96, %s97
      %p111 = scmp.eq.s32.totalorder %s21, 1
      %p112 = por %p110, %p111
      %p114 = scmp.ne.s32.totalorder %s97, %s113
      %p115 = scmp.eq.s32.totalorder %s21, 0
      %p116 = por %p114, %p115
      %p117 = scmp.le.s32.totalorder 1, %s15
      %p118 = scmp.lt.s32.totalorder %s15, 3
      %p119 = pnand %p117, %p118
      %p120 = pneg %p119
      // Predicated region
      $region9: #{tpu_custom_call.1} parent=5 // pred_check
        _
      $region10: #{tpu_custom_call.1} parent=5 // pred_check_branch
        %122 = sbr.rel (%p119) target = $region12
      $region11: #{tpu_custom_call.1} parent=5 // pred_region
        %s123 = ssub.s32 %s15, 1
        // Predicated region
        $region13: #{tpu_custom_call.1} parent=11 // pred_check
          %p124 = pneg %p62
        $region14: #{tpu_custom_call.1} parent=11 // pred_check_branch
          %126 = sbr.rel (%p124) target = $region16
        $region15: #{tpu_custom_call.1} parent=11 // pred_region
          _
        $region16: #{tpu_custom_call.1} parent=11 // pred_fallthru
          _
        // Predicated region
        $region17: #{tpu_custom_call.1} parent=11 // pred_check
          %p127 = pneg %p83
        $region18: #{tpu_custom_call.1} parent=11 // pred_check_branch
          %129 = sbr.rel (%p127) target = $region20
        $region19: #{tpu_custom_call.1} parent=11 // pred_region
          _
        $region20: #{tpu_custom_call.1} parent=11 // pred_fallthru
          _
      $region12: #{tpu_custom_call.1} parent=5 // pred_fallthru
        _
      %p130 = scmp.lt.s32.totalorder %s15, 2
      // Predicated region
      $region21: #{tpu_custom_call.1} parent=5 // pred_check
        %p131 = pneg %p130
      $region22: #{tpu_custom_call.1} parent=5 // pred_check_branch
        %133 = sbr.rel (%p131) target = $region24
      $region23: #{tpu_custom_call.1} parent=5 // pred_region
        // Predicated region
        $region25: #{tpu_custom_call.1} parent=23 // pred_check
          %p134 = pneg %p35
        $region26: #{tpu_custom_call.1} parent=23 // pred_check_branch
          %136 = sbr.rel (%p134) target = $region28
        $region27: #{tpu_custom_call.1} parent=23 // pred_region
          %s137 = sand.u32 %s25, 1
          %s138 = scalar_lea.sflag [#allocation5], %s137
          %s139 = sand.u32 %s25, 1
          %s140 = smul.addr %s139, 8
          %s141 = scalar_lea.vmem [#allocation4], %s140
          %s143 = ssub.s32 128, 128
          %144 = vsyncadd %s138, %s143
          %s145 = smul.addr %s15, 2
          %s146 = smul.addr %s145, 64
          %s147 = scalar_lea.hbm %s0, %s146
          %s149 = sshll.u32 %s141, 4
          %s150 = int_to_ptr.vmem [resolvable:$true] %s149
          %152 = dma.hbm_to_vmem [thread:$0]  %s147, 128, %s150, %s138
        $region28: #{tpu_custom_call.1} parent=23 // pred_fallthru
          _
      $region24: #{tpu_custom_call.1} parent=5 // pred_fallthru
        _
      %p153 = scmp.le.s32.totalorder 1, %s15
      %p154 = scmp.lt.s32.totalorder %s15, 3
      %p155 = pnand %p153, %p154
      %p156 = pneg %p155
      // Predicated region
      $region29: #{tpu_custom_call.1} parent=5 // pred_check
        _
      $region30: #{tpu_custom_call.1} parent=5 // pred_check_branch
        %158 = sbr.rel (%p155) target = $region32
      $region31: #{tpu_custom_call.1} parent=5 // pred_region
        %s159 = ssub.s32 %s15, 1
        %s160 = sand.u32 %s28, 1
        %s161 = scalar_lea.sflag [#allocation5], %s160
        %s162 = sand.u32 %s28, 1
        %s163 = smul.addr %s162, 8
        %s164 = scalar_lea.vmem [#allocation4], %s163
        // Predicated region
        $region33: #{tpu_custom_call.1} parent=31 // pred_check
          %p165 = pneg %p41
        $region34: #{tpu_custom_call.1} parent=31 // pred_check_branch
          %167 = sbr.rel (%p165) target = $region36
        $region35: #{tpu_custom_call.1} parent=31 // pred_region
          %168 = dma.done %s161, 128
        $region36: #{tpu_custom_call.1} parent=31 // pred_fallthru
          _
        %s169 = sand.u32 %s28, 1
        %s170 = scalar_lea.sflag [#allocation5], %s169
        %s171 = sand.u32 %s28, 1
        %s172 = smul.addr %s171, 8
        %s173 = scalar_lea.vmem [#allocation4], %s172
        %p174 = pneg %p41
        %p175 = pneg %p38
        %p176 = pneg %p62
        %p177 = pneg %p59
        %p178 = pneg %p83
        %p179 = pneg %p80
        %p180 = pneg %p109
        %p181 = pneg %p106
        %s182 = sand.u32 %s96, 1
        %s183 = scalar_lea.sflag [#allocation6], %s182
        %s184 = sand.u32 %s96, 1
        %s185 = smul.addr %s184, 16
        %s186 = scalar_lea.vmem [#allocation7], %s185
        %187 = vst [vmem:[#allocation2] sm:$0xff] 0.0
        %188 = vst [vmem:[#allocation2 + $0x8] sm:$0xff] 0.0
        %v189 = vld [vmem:[%s164] sm:$0xff]
        %190 = vst [vmem:[#allocation2 + $0x4] sm:$0xff] %v189
        %v191 = vlaneseq
        %v192 = vand.u32 %v191, 127
        %v193 = vadd.s32 %v192, 128
        %vm194 = vcmp.lt.s32.totalorder %v192, 0
        %v195 = vsub.s32 0, %v192
        %v196 = vsel %vm194, %v195, %v192
        %v197 = vshrl.u32 %v196, 4
        %v198 = vand.u32 %v196, 15
        %v199 = vsub.s32 0, %v198
        %v200 = vsel %vm194, %v199, %v198
        %vm201 = vcmp.lt.s32.totalorder %v193, 0
        %v202 = vsub.s32 0, %v193
        %v203 = vsel %vm201, %v202, %v193
        %v204 = vshrl.u32 %v203, 4
        %v205 = vand.u32 %v203, 15
        %v206 = vsub.s32 0, %v205
        %v207 = vsel %vm201, %v206, %v205
        %vm208 = vcmp.ne.s32.totalorder %v200, 0
        %vm209 = vcmp.ne.s32.totalorder %v207, 0
        %vm210 = vcmp.lt.s32.totalorder %v200, 0
        %vm211 = vcmp.lt.s32.totalorder %v207, 0
        %vm212 = vmand %vm210, %vm208
        %vm213 = vmand %vm211, %vm209
        %v214 = vadd.s32 %v200, 16
        %v215 = vadd.s32 %v207, 16
        %v216 = vsel %vm212, %v214, %v200
        %v217 = vsel %vm213, %v215, %v207
        %vm218 = vcmp.ge.s32.totalorder %v216, 3
        %vm219 = vcmp.ge.s32.totalorder %v217, 3
        %vm220 = vcmp.lt.s32.totalorder %v216, 19
        %vm221 = vcmp.lt.s32.totalorder %v217, 19
        %vm222 = vmand %vm218, %vm220
        %vm223 = vmand %vm219, %vm221
        %v224 = vsel %vm222, 1, 0
        %v225 = vsel %vm223, 1, 0
        %v226 = vcvt.s32.f32 %v224
        %v227 = vcvt.s32.f32 %v225
        %v228 = vadd.s32 %v216, 1
        %v229 = vadd.s32 %v217, 1
        %vm230 = vcmp.ge.s32.totalorder %v228, 3
        %vm231 = vcmp.ge.s32.totalorder %v229, 3
        %vm232 = vcmp.lt.s32.totalorder %v228, 19
        %vm233 = vcmp.lt.s32.totalorder %v229, 19
        %vm234 = vmand %vm230, %vm232
        %vm235 = vmand %vm231, %vm233
        %v236 = vsel %vm234, 1, 0
        %v237 = vsel %vm235, 1, 0
        %v238 = vcvt.s32.f32 %v236
        %v239 = vcvt.s32.f32 %v237
        %v240 = vadd.s32 %v216, 2
        %v241 = vadd.s32 %v217, 2
        %vm242 = vcmp.ge.s32.totalorder %v240, 3
        %vm243 = vcmp.ge.s32.totalorder %v241, 3
        %vm244 = vcmp.lt.s32.totalorder %v240, 19
        %vm245 = vcmp.lt.s32.totalorder %v241, 19
        %vm246 = vmand %vm242, %vm244
        %vm247 = vmand %vm243, %vm245
        %v248 = vsel %vm246, 1, 0
        %v249 = vsel %vm247, 1, 0
        %v250 = vcvt.s32.f32 %v248
        %v251 = vcvt.s32.f32 %v249
        %v252 = vadd.s32 %v216, 3
        %v253 = vadd.s32 %v217, 3
        %vm254 = vcmp.ge.s32.totalorder %v252, 3
        %vm255 = vcmp.ge.s32.totalorder %v253, 3
        %vm256 = vcmp.lt.s32.totalorder %v252, 19
        %vm257 = vcmp.lt.s32.totalorder %v253, 19
        %vm258 = vmand %vm254, %vm256
        %vm259 = vmand %vm255, %vm257
        %v260 = vsel %vm258, 1, 0
        %v261 = vsel %vm259, 1, 0
        %v262 = vcvt.s32.f32 %v260
        %v263 = vcvt.s32.f32 %v261
        %v264 = vadd.s32 %v216, 4
        %v265 = vadd.s32 %v217, 4
        %vm266 = vcmp.ge.s32.totalorder %v264, 3
        %vm267 = vcmp.ge.s32.totalorder %v265, 3
        %vm268 = vcmp.lt.s32.totalorder %v264, 19
        %vm269 = vcmp.lt.s32.totalorder %v265, 19
        %vm270 = vmand %vm266, %vm268
        %vm271 = vmand %vm267, %vm269
        %v272 = vsel %vm270, 1, 0
        %v273 = vsel %vm271, 1, 0
        %v274 = vcvt.s32.f32 %v272
        %v275 = vcvt.s32.f32 %v273
        %v276 = vadd.s32 %v216, 5
        %v277 = vadd.s32 %v217, 5
        %vm278 = vcmp.ge.s32.totalorder %v276, 3
        %vm279 = vcmp.ge.s32.totalorder %v277, 3
        %vm280 = vcmp.lt.s32.totalorder %v276, 19
        %vm281 = vcmp.lt.s32.totalorder %v277, 19
        %vm282 = vmand %vm278, %vm280
        %vm283 = vmand %vm279, %vm281
        %v284 = vsel %vm282, 1, 0
        %v285 = vsel %vm283, 1, 0
        %v286 = vcvt.s32.f32 %v284
        %v287 = vcvt.s32.f32 %v285
        %v288 = vadd.s32 %v216, 6
        %v289 = vadd.s32 %v217, 6
        %vm290 = vcmp.ge.s32.totalorder %v288, 3
        %vm291 = vcmp.ge.s32.totalorder %v289, 3
        %vm292 = vcmp.lt.s32.totalorder %v288, 19
        %vm293 = vcmp.lt.s32.totalorder %v289, 19
        %vm294 = vmand %vm290, %vm292
        %vm295 = vmand %vm291, %vm293
        %v296 = vsel %vm294, 1, 0
        %v297 = vsel %vm295, 1, 0
        %v298 = vcvt.s32.f32 %v296
        %v299 = vcvt.s32.f32 %v297
        %v300 = vld [vmem:[#allocation2] sm:$0xff]
        %v301 = vld [vmem:[#allocation2 + $0x8] sm:$0xf]
        %v304 = vcombine.low %v238, %v239
        %305 = vrot.lane.b32.xlu0 %v304, 78
        %v306 = vpop.permute.xlu0 %305
        %v307 = vrot.slane %v306, 4
        %vm308 = vcmask 637952
        %v309 = vsel %vm308, %v307, %v306
        %v312 = vmul.f32 %v300, %v309
        %v313 = vmul.f32 %v301, %v307
        %v316 = vcombine.high %v312, %v312
        %317 = vrot.lane.b32.xlu0 %v312, 50
        %v318 = vpop.permute.xlu0 %317
        %319 = vrot.lane.b32.xlu0 %v316, 50
        %v320 = vpop.permute.xlu0 %319
        %321 = vrot.lane.b32.xlu0 %v313, 50
        %v322 = vpop.permute.xlu0 %321
        %vm323 = vcmask 408576
        %v324 = vsel %vm323, %v318, %v320
        %v325 = vsel %vm323, %v320, %v322
        %328 = vst [vmem:[#allocation3] sm:$0xf] %v324
        %329 = vst [vmem:[#allocation3 + $0x8] sm:$0xf] %v325
        %v330 = vld [vmem:[#allocation2] sm:$0xff]
        %v331 = vld [vmem:[#allocation2 + $0x8] sm:$0xf]
        %v334 = vcombine.low %v262, %v263
        %335 = vrot.lane.b32.xlu0 %v334, 80
        %v336 = vpop.permute.xlu0 %335
        %v337 = vrot.slane %v336, 4
        %vm338 = vcmask 654336
        %v339 = vsel %vm338, %v337, %v336
        %v342 = vmul.f32 %v330, %v339
        %v343 = vmul.f32 %v331, %v337
        %v346 = vcombine.low %v342, %v342
        %v347 = vcombine.low %v343, %v343
        %348 = vrot.lane.b32.xlu0 %v346, 48
        %v349 = vpop.permute.xlu0 %348
        %350 = vrot.lane.b32.xlu0 %v342, 48
        %v351 = vpop.permute.xlu0 %350
        %352 = vrot.lane.b32.xlu0 %v347, 48
        %v353 = vpop.permute.xlu0 %352
        %vm354 = vcmask 392192
        %v355 = vsel %vm354, %v349, %v351
        %v356 = vsel %vm354, %v351, %v353
        %359 = vst [vmem:[#allocation3] sm:$0xf0] %v355
        %360 = vst [vmem:[#allocation3 + $0x8] sm:$0xf0] %v356
        %v361 = vld [vmem:[#allocation2] sm:$0xff]
        %v362 = vld [vmem:[#allocation2 + $0x8] sm:$0xf]
        %v365 = vcombine.low %v286, %v287
        %366 = vrot.lane.b32.xlu0 %v365, 82
        %v367 = vpop.permute.xlu0 %366
        %v368 = vrot.slane %v367, 4
        %vm369 = vcmask 670720
        %v370 = vsel %vm369, %v368, %v367
        %v373 = vmul.f32 %v361, %v370
        %v374 = vmul.f32 %v362, %v368
        %v377 = vcombine.high %v373, %v373
        %378 = vrot.lane.b32.xlu0 %v373, 46
        %v379 = vpop.permute.xlu0 %378
        %380 = vrot.lane.b32.xlu0 %v377, 46
        %v381 = vpop.permute.xlu0 %380
        %382 = vrot.lane.b32.xlu0 %v374, 46
        %v383 = vpop.permute.xlu0 %382
        %vm384 = vcmask 375808
        %v385 = vsel %vm384, %v379, %v381
        %v386 = vsel %vm384, %v381, %v383
        %389 = vst [vmem:[#allocation3 + $0x10] sm:$0xf] %v385
        %390 = vst [vmem:[#allocation3 + $0x18] sm:$0xf] %v386
        %v391 = vld [vmem:[#allocation2] sm:$0xff]
        %v392 = vld [vmem:[#allocation2 + $0x8] sm:$0xf]
        %v395 = vcombine.low %v226, %v227
        %396 = vrot.lane.b32.xlu0 %v395, 93
        %v397 = vpop.permute.xlu0 %396
        %v398 = vrot.slane %v397, 4
        %vm399 = vcmask 760832
        %v400 = vsel %vm399, %v398, %v397
        %v403 = vmul.f32 %v391, %v400
        %v404 = vmul.f32 %v392, %v398
        %v407 = vcombine.low %v403, %v403
        %v408 = vcombine.low %v404, %v404
        %409 = vrot.lane.b32.xlu0 %v407, 35
        %v410 = vpop.permute.xlu0 %409
        %411 = vrot.lane.b32.xlu0 %v403, 35
        %v412 = vpop.permute.xlu0 %411
        %413 = vrot.lane.b32.xlu0 %v408, 35
        %v414 = vpop.permute.xlu0 %413
        %vm415 = vcmask 285696
        %v416 = vsel %vm415, %v410, %v412
        %v417 = vsel %vm415, %v412, %v414
        %420 = vst [vmem:[#allocation3 + $0x10] sm:$0xf0] %v416
        %421 = vst [vmem:[#allocation3 + $0x18] sm:$0xf0] %v417
        %v422 = vld [vmem:[#allocation2] sm:$0xff]
        %v423 = vld [vmem:[#allocation2 + $0x8] sm:$0xf]
        %v426 = vcombine.low %v250, %v251
        %427 = vrot.lane.b32.xlu0 %v426, 95
        %v428 = vpop.permute.xlu0 %427
        %v429 = vrot.slane %v428, 4
        %vm430 = vcmask 777216
        %v431 = vsel %vm430, %v429, %v428
        %v434 = vmul.f32 %v422, %v431
        %v435 = vmul.f32 %v423, %v429
        %v438 = vcombine.high %v434, %v434
        %439 = vrot.lane.b32.xlu0 %v434, 33
        %v440 = vpop.permute.xlu0 %439
        %441 = vrot.lane.b32.xlu0 %v438, 33
        %v442 = vpop.permute.xlu0 %441
        %443 = vrot.lane.b32.xlu0 %v435, 33
        %v444 = vpop.permute.xlu0 %443
        %vm445 = vcmask 269312
        %v446 = vsel %vm445, %v440, %v442
        %v447 = vsel %vm445, %v442, %v444
        %450 = vst [vmem:[#allocation3 + $0x20] sm:$0xf] %v446
        %451 = vst [vmem:[#allocation3 + $0x28] sm:$0xf] %v447
        %v452 = vld [vmem:[#allocation2] sm:$0xff]
        %v453 = vld [vmem:[#allocation2 + $0x8] sm:$0xf]
        %v456 = vcombine.low %v274, %v275
        %457 = vrot.lane.b32.xlu0 %v456, 97
        %v458 = vpop.permute.xlu0 %457
        %v459 = vrot.slane %v458, 4
        %vm460 = vcmask 793600
        %v461 = vsel %vm460, %v459, %v458
        %v464 = vmul.f32 %v452, %v461
        %v465 = vmul.f32 %v453, %v459
        %v468 = vcombine.low %v464, %v464
        %v469 = vcombine.low %v465, %v465
        %470 = vrot.lane.b32.xlu0 %v468, 31
        %v471 = vpop.permute.xlu0 %470
        %472 = vrot.lane.b32.xlu0 %v464, 31
        %v473 = vpop.permute.xlu0 %472
        %474 = vrot.lane.b32.xlu0 %v469, 31
        %v475 = vpop.permute.xlu0 %474
        %vm476 = vcmask 252928
        %v477 = vsel %vm476, %v471, %v473
        %v478 = vsel %vm476, %v473, %v475
        %481 = vst [vmem:[#allocation3 + $0x20] sm:$0xf0] %v477
        %482 = vst [vmem:[#allocation3 + $0x28] sm:$0xf0] %v478
        %v483 = vld [vmem:[#allocation2] sm:$0xff]
        %v484 = vld [vmem:[#allocation2 + $0x8] sm:$0xf]
        %v487 = vcombine.low %v298, %v299
        %488 = vrot.lane.b32.xlu0 %v487, 99
        %v489 = vpop.permute.xlu0 %488
        %v490 = vrot.slane %v489, 4
        %vm491 = vcmask 809984
        %v492 = vsel %vm491, %v490, %v489
        %v495 = vmul.f32 %v483, %v492
        %v496 = vmul.f32 %v484, %v490
        %v499 = vcombine.high %v495, %v495
        %500 = vrot.lane.b32.xlu0 %v495, 29
        %v501 = vpop.permute.xlu0 %500
        %502 = vrot.lane.b32.xlu0 %v499, 29
        %v503 = vpop.permute.xlu0 %502
        %504 = vrot.lane.b32.xlu0 %v496, 29
        %v505 = vpop.permute.xlu0 %504
        %vm506 = vcmask 236544
        %v507 = vsel %vm506, %v501, %v503
        %v508 = vsel %vm506, %v503, %v505
        %511 = vst [vmem:[#allocation3 + $0x30] sm:$0xf] %v507
        %512 = vst [vmem:[#allocation3 + $0x38] sm:$0xf] %v508
        %v513 = vld [vmem:[#allocation2] sm:$0xff]
        %v514 = vld [vmem:[#allocation2 + $0x8] sm:$0xf]
        %515 = vrot.lane.b32.xlu0 %v304, 110
        %v516 = vpop.permute.xlu0 %515
        %v517 = vrot.slane %v516, 4
        %vm518 = vcmask 900096
        %v519 = vsel %vm518, %v517, %v516
        %v522 = vmul.f32 %v513, %v519
        %v523 = vmul.f32 %v514, %v517
        %v526 = vcombine.low %v522, %v522
        %v527 = vcombine.low %v523, %v523
        %528 = vrot.lane.b32.xlu0 %v526, 18
        %v529 = vpop.permute.xlu0 %528
        %530 = vrot.lane.b32.xlu0 %v522, 18
        %v531 = vpop.permute.xlu0 %530
        %532 = vrot.lane.b32.xlu0 %v527, 18
        %v533 = vpop.permute.xlu0 %532
        %vm534 = vcmask 146432
        %v535 = vsel %vm534, %v529, %v531
        %v536 = vsel %vm534, %v531, %v533
        %539 = vst [vmem:[#allocation3 + $0x30] sm:$0xf0] %v535
        %540 = vst [vmem:[#allocation3 + $0x38] sm:$0xf0] %v536
        %v541 = vld [vmem:[#allocation2] sm:$0xff]
        %v542 = vld [vmem:[#allocation2 + $0x8] sm:$0xf]
        %543 = vrot.lane.b32.xlu0 %v334, 112
        %v544 = vpop.permute.xlu0 %543
        %v545 = vrot.slane %v544, 4
        %vm546 = vcmask 916480
        %v547 = vsel %vm546, %v545, %v544
        %v550 = vmul.f32 %v541, %v547
        %v551 = vmul.f32 %v542, %v545
        %v554 = vcombine.high %v550, %v550
        %555 = vrot.lane.b32.xlu0 %v550, 16
        %v556 = vpop.permute.xlu0 %555
        %557 = vrot.lane.b32.xlu0 %v554, 16
        %v558 = vpop.permute.xlu0 %557
        %559 = vrot.lane.b32.xlu0 %v551, 16
        %v560 = vpop.permute.xlu0 %559
        %vm561 = vcmask 130048
        %v562 = vsel %vm561, %v556, %v558
        %v563 = vsel %vm561, %v558, %v560
        %566 = vst [vmem:[#allocation3 + $0x40] sm:$0xf] %v562
        %567 = vst [vmem:[#allocation3 + $0x48] sm:$0xf] %v563
        %v568 = vld [vmem:[#allocation2] sm:$0xff]
        %v569 = vld [vmem:[#allocation2 + $0x8] sm:$0xf]
        %570 = vrot.lane.b32.xlu0 %v365, 114
        %v571 = vpop.permute.xlu0 %570
        %v572 = vrot.slane %v571, 4
        %vm573 = vcmask 932864
        %v574 = vsel %vm573, %v572, %v571
        %v577 = vmul.f32 %v568, %v574
        %v578 = vmul.f32 %v569, %v572
        %v581 = vcombine.low %v577, %v577
        %v582 = vcombine.low %v578, %v578
        %583 = vrot.lane.b32.xlu0 %v581, 14
        %v584 = vpop.permute.xlu0 %583
        %585 = vrot.lane.b32.xlu0 %v577, 14
        %v586 = vpop.permute.xlu0 %585
        %587 = vrot.lane.b32.xlu0 %v582, 14
        %v588 = vpop.permute.xlu0 %587
        %vm589 = vcmask 113664
        %v590 = vsel %vm589, %v584, %v586
        %v591 = vsel %vm589, %v586, %v588
        %594 = vst [vmem:[#allocation3 + $0x40] sm:$0xf0] %v590
        %595 = vst [vmem:[#allocation3 + $0x48] sm:$0xf0] %v591
        %v596 = vld [vmem:[#allocation2] sm:$0xff]
        %v597 = vld [vmem:[#allocation2 + $0x8] sm:$0xf]
        %598 = vrot.lane.b32.xlu0 %v395, 125
        %v599 = vpop.permute.xlu0 %598
        %v600 = vrot.slane %v599, 4
        %vm601 = vcmask 1022976
        %v602 = vsel %vm601, %v600, %v599
        %v605 = vmul.f32 %v596, %v602
        %v606 = vmul.f32 %v597, %v600
        %v609 = vcombine.high %v605, %v605
        %610 = vrot.lane.b32.xlu0 %v605, 3
        %v611 = vpop.permute.xlu0 %610
        %612 = vrot.lane.b32.xlu0 %v609, 3
        %v613 = vpop.permute.xlu0 %612
        %614 = vrot.lane.b32.xlu0 %v606, 3
        %v615 = vpop.permute.xlu0 %614
        %vm616 = vcmask 23552
        %v617 = vsel %vm616, %v611, %v613
        %v618 = vsel %vm616, %v613, %v615
        %621 = vst [vmem:[#allocation3 + $0x50] sm:$0xf] %v617
        %622 = vst [vmem:[#allocation3 + $0x58] sm:$0xf] %v618
        %v623 = vld [vmem:[#allocation2] sm:$0xff]
        %v624 = vld [vmem:[#allocation2 + $0x8] sm:$0xf]
        %625 = vrot.lane.b32.xlu0 %v426, 127
        %v626 = vpop.permute.xlu0 %625
        %v627 = vrot.slane %v626, 4
        %vm628 = vcmask 1039360
        %v629 = vsel %vm628, %v627, %v626
        %v632 = vmul.f32 %v623, %v629
        %v633 = vmul.f32 %v624, %v627
        %v636 = vcombine.low %v632, %v632
        %v637 = vcombine.low %v633, %v633
        %638 = vrot.lane.b32.xlu0 %v636, 1
        %v639 = vpop.permute.xlu0 %638
        %640 = vrot.lane.b32.xlu0 %v632, 1
        %v641 = vpop.permute.xlu0 %640
        %642 = vrot.lane.b32.xlu0 %v637, 1
        %v643 = vpop.permute.xlu0 %642
        %vm644 = vcmask 7168
        %v645 = vsel %vm644, %v639, %v641
        %v646 = vsel %vm644, %v641, %v643
        %649 = vst [vmem:[#allocation3 + $0x50] sm:$0xf0] %v645
        %650 = vst [vmem:[#allocation3 + $0x58] sm:$0xf0] %v646
        %v651 = vld [vmem:[#allocation2 + $0x4] sm:$0xff]
        %v652 = vld [vmem:[#allocation2 + $0xc] sm:$0xf]
        %653 = vrot.lane.b32.xlu0 %v456, 1
        %v654 = vpop.permute.xlu0 %653
        %v655 = vrot.slane %v654, 4
        %v656 = vsel %vm644, %v655, %v654
        %v659 = vmul.f32 %v651, %v656
        %v660 = vmul.f32 %v652, %v655
        %v663 = vcombine.high %v659, %v659
        %664 = vrot.lane.b32.xlu0 %v659, 127
        %v665 = vpop.permute.xlu0 %664
        %666 = vrot.lane.b32.xlu0 %v663, 127
        %v667 = vpop.permute.xlu0 %666
        %668 = vrot.lane.b32.xlu0 %v660, 127
        %v669 = vpop.permute.xlu0 %668
        %v670 = vsel %vm628, %v665, %v667
        %v671 = vsel %vm628, %v667, %v669
        %674 = vst [vmem:[#allocation3 + $0x60] sm:$0xf] %v670
        %675 = vst [vmem:[#allocation3 + $0x68] sm:$0xf] %v671
        %v676 = vld [vmem:[#allocation2 + $0x4] sm:$0xff]
        %v677 = vld [vmem:[#allocation2 + $0xc] sm:$0xf]
        %678 = vrot.lane.b32.xlu0 %v487, 3
        %v679 = vpop.permute.xlu0 %678
        %v680 = vrot.slane %v679, 4
        %v681 = vsel %vm616, %v680, %v679
        %v684 = vmul.f32 %v676, %v681
        %v685 = vmul.f32 %v677, %v680
        %v688 = vcombine.low %v684, %v684
        %v689 = vcombine.low %v685, %v685
        %690 = vrot.lane.b32.xlu0 %v688, 125
        %v691 = vpop.permute.xlu0 %690
        %692 = vrot.lane.b32.xlu0 %v684, 125
        %v693 = vpop.permute.xlu0 %692
        %694 = vrot.lane.b32.xlu0 %v689, 125
        %v695 = vpop.permute.xlu0 %694
        %v696 = vsel %vm601, %v691, %v693
        %v697 = vsel %vm601, %v693, %v695
        %700 = vst [vmem:[#allocation3 + $0x60] sm:$0xf0] %v696
        %701 = vst [vmem:[#allocation3 + $0x68] sm:$0xf0] %v697
        %v702 = vld [vmem:[#allocation2 + $0x4] sm:$0xff]
        %v703 = vld [vmem:[#allocation2 + $0xc] sm:$0xf]
        %704 = vrot.lane.b32.xlu0 %v304, 14
        %v705 = vpop.permute.xlu0 %704
        %v706 = vrot.slane %v705, 4
        %v707 = vsel %vm589, %v706, %v705
        %v710 = vmul.f32 %v702, %v707
        %v711 = vmul.f32 %v703, %v706
        %v714 = vcombine.high %v710, %v710
        %715 = vrot.lane.b32.xlu0 %v710, 114
        %v716 = vpop.permute.xlu0 %715
        %717 = vrot.lane.b32.xlu0 %v714, 114
        %v718 = vpop.permute.xlu0 %717
        %719 = vrot.lane.b32.xlu0 %v711, 114
        %v720 = vpop.permute.xlu0 %719
        %v721 = vsel %vm573, %v716, %v718
        %v722 = vsel %vm573, %v718, %v720
        %725 = vst [vmem:[#allocation3 + $0x70] sm:$0xf] %v721
        %726 = vst [vmem:[#allocation3 + $0x78] sm:$0xf] %v722
        %v727 = vld [vmem:[#allocation2 + $0x4] sm:$0xff]
        %v728 = vld [vmem:[#allocation2 + $0xc] sm:$0xf]
        %729 = vrot.lane.b32.xlu0 %v334, 16
        %v730 = vpop.permute.xlu0 %729
        %v731 = vrot.slane %v730, 4
        %v732 = vsel %vm561, %v731, %v730
        %v735 = vmul.f32 %v727, %v732
        %v736 = vmul.f32 %v728, %v731
        %v739 = vcombine.low %v735, %v735
        %v740 = vcombine.low %v736, %v736
        %741 = vrot.lane.b32.xlu0 %v739, 112
        %v742 = vpop.permute.xlu0 %741
        %743 = vrot.lane.b32.xlu0 %v735, 112
        %v744 = vpop.permute.xlu0 %743
        %745 = vrot.lane.b32.xlu0 %v740, 112
        %v746 = vpop.permute.xlu0 %745
        %v747 = vsel %vm546, %v742, %v744
        %v748 = vsel %vm546, %v744, %v746
        %751 = vst [vmem:[#allocation3 + $0x70] sm:$0xf0] %v747
        %752 = vst [vmem:[#allocation3 + $0x78] sm:$0xf0] %v748
        %v753 = vld [vmem:[#allocation2 + $0x4] sm:$0xff]
        %v754 = vld [vmem:[#allocation2 + $0xc] sm:$0xf]
        %755 = vrot.lane.b32.xlu0 %v365, 18
        %v756 = vpop.permute.xlu0 %755
        %v757 = vrot.slane %v756, 4
        %v758 = vsel %vm534, %v757, %v756
        %v761 = vmul.f32 %v753, %v758
        %v762 = vmul.f32 %v754, %v757
        %v765 = vcombine.high %v761, %v761
        %766 = vrot.lane.b32.xlu0 %v761, 110
        %v767 = vpop.permute.xlu0 %766
        %768 = vrot.lane.b32.xlu0 %v765, 110
        %v769 = vpop.permute.xlu0 %768
        %770 = vrot.lane.b32.xlu0 %v762, 110
        %v771 = vpop.permute.xlu0 %770
        %v772 = vsel %vm518, %v767, %v769
        %v773 = vsel %vm518, %v769, %v771
        %776 = vst [vmem:[#allocation3 + $0x80] sm:$0xf] %v772
        %777 = vst [vmem:[#allocation3 + $0x88] sm:$0xf] %v773
        %v778 = vld [vmem:[#allocation2 + $0x4] sm:$0xff]
        %v779 = vld [vmem:[#allocation2 + $0xc] sm:$0xf]
        %780 = vrot.lane.b32.xlu0 %v395, 29
        %v781 = vpop.permute.xlu0 %780
        %v782 = vrot.slane %v781, 4
        %v783 = vsel %vm506, %v782, %v781
        %v786 = vmul.f32 %v778, %v783
        %v787 = vmul.f32 %v779, %v782
        %v790 = vcombine.low %v786, %v786
        %v791 = vcombine.low %v787, %v787
        %792 = vrot.lane.b32.xlu0 %v790, 99
        %v793 = vpop.permute.xlu0 %792
        %794 = vrot.lane.b32.xlu0 %v786, 99
        %v795 = vpop.permute.xlu0 %794
        %796 = vrot.lane.b32.xlu0 %v791, 99
        %v797 = vpop.permute.xlu0 %796
        %v798 = vsel %vm491, %v793, %v795
        %v799 = vsel %vm491, %v795, %v797
        %802 = vst [vmem:[#allocation3 + $0x80] sm:$0xf0] %v798
        %803 = vst [vmem:[#allocation3 + $0x88] sm:$0xf0] %v799
        %v804 = vld [vmem:[#allocation2 + $0x4] sm:$0xff]
        %v805 = vld [vmem:[#allocation2 + $0xc] sm:$0xf]
        %806 = vrot.lane.b32.xlu0 %v426, 31
        %v807 = vpop.permute.xlu0 %806
        %v808 = vrot.slane %v807, 4
        %v809 = vsel %vm476, %v808, %v807
        %v812 = vmul.f32 %v804, %v809
        %v813 = vmul.f32 %v805, %v808
        %v816 = vcombine.high %v812, %v812
        %817 = vrot.lane.b32.xlu0 %v812, 97
        %v818 = vpop.permute.xlu0 %817
        %819 = vrot.lane.b32.xlu0 %v816, 97
        %v820 = vpop.permute.xlu0 %819
        %821 = vrot.lane.b32.xlu0 %v813, 97
        %v822 = vpop.permute.xlu0 %821
        %v823 = vsel %vm460, %v818, %v820
        %v824 = vsel %vm460, %v820, %v822
        %827 = vst [vmem:[#allocation3 + $0x90] sm:$0xf] %v823
        %828 = vst [vmem:[#allocation3 + $0x98] sm:$0xf] %v824
        %v829 = vld [vmem:[#allocation2 + $0x4] sm:$0xff]
        %v830 = vld [vmem:[#allocation2 + $0xc] sm:$0xf]
        %831 = vrot.lane.b32.xlu0 %v456, 33
        %v832 = vpop.permute.xlu0 %831
        %v833 = vrot.slane %v832, 4
        %v834 = vsel %vm445, %v833, %v832
        %v837 = vmul.f32 %v829, %v834
        %v838 = vmul.f32 %v830, %v833
        %v841 = vcombine.low %v837, %v837
        %v842 = vcombine.low %v838, %v838
        %843 = vrot.lane.b32.xlu0 %v841, 95
        %v844 = vpop.permute.xlu0 %843
        %845 = vrot.lane.b32.xlu0 %v837, 95
        %v846 = vpop.permute.xlu0 %845
        %847 = vrot.lane.b32.xlu0 %v842, 95
        %v848 = vpop.permute.xlu0 %847
        %v849 = vsel %vm430, %v844, %v846
        %v850 = vsel %vm430, %v846, %v848
        %853 = vst [vmem:[#allocation3 + $0x90] sm:$0xf0] %v849
        %854 = vst [vmem:[#allocation3 + $0x98] sm:$0xf0] %v850
        %v855 = vld [vmem:[#allocation2 + $0x4] sm:$0xff]
        %v856 = vld [vmem:[#allocation2 + $0xc] sm:$0xf]
        %857 = vrot.lane.b32.xlu0 %v487, 35
        %v858 = vpop.permute.xlu0 %857
        %v859 = vrot.slane %v858, 4
        %v860 = vsel %vm415, %v859, %v858
        %v863 = vmul.f32 %v855, %v860
        %v864 = vmul.f32 %v856, %v859
        %v867 = vcombine.high %v863, %v863
        %868 = vrot.lane.b32.xlu0 %v863, 93
        %v869 = vpop.permute.xlu0 %868
        %870 = vrot.lane.b32.xlu0 %v867, 93
        %v871 = vpop.permute.xlu0 %870
        %872 = vrot.lane.b32.xlu0 %v864, 93
        %v873 = vpop.permute.xlu0 %872
        %v874 = vsel %vm399, %v869, %v871
        %v875 = vsel %vm399, %v871, %v873
        %878 = vst [vmem:[#allocation3 + $0xa0] sm:$0xf] %v874
        %879 = vst [vmem:[#allocation3 + $0xa8] sm:$0xf] %v875
        %v880 = vld [vmem:[#allocation2 + $0x4] sm:$0xff]
        %v881 = vld [vmem:[#allocation2 + $0xc] sm:$0xf]
        %882 = vrot.lane.b32.xlu0 %v304, 46
        %v883 = vpop.permute.xlu0 %882
        %v884 = vrot.slane %v883, 4
        %v885 = vsel %vm384, %v884, %v883
        %v888 = vmul.f32 %v880, %v885
        %v889 = vmul.f32 %v881, %v884
        %v892 = vcombine.low %v888, %v888
        %v893 = vcombine.low %v889, %v889
        %894 = vrot.lane.b32.xlu0 %v892, 82
        %v895 = vpop.permute.xlu0 %894
        %896 = vrot.lane.b32.xlu0 %v888, 82
        %v897 = vpop.permute.xlu0 %896
        %898 = vrot.lane.b32.xlu0 %v893, 82
        %v899 = vpop.permute.xlu0 %898
        %v900 = vsel %vm369, %v895, %v897
        %v901 = vsel %vm369, %v897, %v899
        %904 = vst [vmem:[#allocation3 + $0xa0] sm:$0xf0] %v900
        %905 = vst [vmem:[#allocation3 + $0xa8] sm:$0xf0] %v901
        %v906 = vld [vmem:[#allocation2 + $0x4] sm:$0xff]
        %v907 = vld [vmem:[#allocation2 + $0xc] sm:$0xf]
        %908 = vrot.lane.b32.xlu0 %v334, 48
        %v909 = vpop.permute.xlu0 %908
        %v910 = vrot.slane %v909, 4
        %v911 = vsel %vm354, %v910, %v909
        %v914 = vmul.f32 %v906, %v911
        %v915 = vmul.f32 %v907, %v910
        %v918 = vcombine.high %v914, %v914
        %919 = vrot.lane.b32.xlu0 %v914, 80
        %v920 = vpop.permute.xlu0 %919
        %921 = vrot.lane.b32.xlu0 %v918, 80
        %v922 = vpop.permute.xlu0 %921
        %923 = vrot.lane.b32.xlu0 %v915, 80
        %v924 = vpop.permute.xlu0 %923
        %v925 = vsel %vm338, %v920, %v922
        %v926 = vsel %vm338, %v922, %v924
        %929 = vst [vmem:[#allocation3 + $0xb0] sm:$0xf] %v925
        %930 = vst [vmem:[#allocation3 + $0xb8] sm:$0xf] %v926
        %v931 = vld [vmem:[#allocation2 + $0x4] sm:$0xff]
        %v932 = vld [vmem:[#allocation2 + $0xc] sm:$0xf]
        %933 = vrot.lane.b32.xlu0 %v365, 50
        %v934 = vpop.permute.xlu0 %933
        %v935 = vrot.slane %v934, 4
        %v936 = vsel %vm323, %v935, %v934
        %v939 = vmul.f32 %v931, %v936
        %v940 = vmul.f32 %v932, %v935
        %v943 = vcombine.low %v939, %v939
        %v944 = vcombine.low %v940, %v940
        %945 = vrot.lane.b32.xlu0 %v943, 78
        %v946 = vpop.permute.xlu0 %945
        %947 = vrot.lane.b32.xlu0 %v939, 78
        %v948 = vpop.permute.xlu0 %947
        %949 = vrot.lane.b32.xlu0 %v944, 78
        %v950 = vpop.permute.xlu0 %949
        %v951 = vsel %vm308, %v946, %v948
        %v952 = vsel %vm308, %v948, %v950
        %955 = vst [vmem:[#allocation3 + $0xb0] sm:$0xf0] %v951
        %956 = vst [vmem:[#allocation3 + $0xb8] sm:$0xf0] %v952
        %v957 = vld [vmem:[%s1] sm:$0xff]
        %v958 = vld [vmem:[#allocation3] sm:$0xff]
        %v959 = vld [vmem:[#allocation3 + $0x8] sm:$0xff]
        %v960 = vld [vmem:[#allocation3 + $0x10] sm:$0xff]
        %v961 = vld [vmem:[#allocation3 + $0x18] sm:$0xff]
        %v962 = vld [vmem:[#allocation3 + $0x20] sm:$0xff]
        %v963 = vld [vmem:[#allocation3 + $0x28] sm:$0xff]
        %v964 = vld [vmem:[#allocation3 + $0x30] sm:$0xff]
        %v965 = vld [vmem:[#allocation3 + $0x38] sm:$0xff]
        %v966 = vld [vmem:[#allocation3 + $0x40] sm:$0xff]
        %v967 = vld [vmem:[#allocation3 + $0x48] sm:$0xff]
        %v968 = vld [vmem:[#allocation3 + $0x50] sm:$0xff]
        %v969 = vld [vmem:[#allocation3 + $0x58] sm:$0xff]
        %v970 = vld [vmem:[#allocation3 + $0x60] sm:$0xff]
        %v971 = vld [vmem:[#allocation3 + $0x68] sm:$0xff]
        %v972 = vld [vmem:[#allocation3 + $0x70] sm:$0xff]
        %v973 = vld [vmem:[#allocation3 + $0x78] sm:$0xff]
        %v974 = vld [vmem:[#allocation3 + $0x80] sm:$0xff]
        %v975 = vld [vmem:[#allocation3 + $0x88] sm:$0xff]
        %v976 = vld [vmem:[#allocation3 + $0x90] sm:$0xff]
        %v977 = vld [vmem:[#allocation3 + $0x98] sm:$0xff]
        %v978 = vld [vmem:[#allocation3 + $0xa0] sm:$0xff]
        %v979 = vld [vmem:[#allocation3 + $0xa8] sm:$0xff]
        %v980 = vld [vmem:[#allocation3 + $0xb0] sm:$0xff]
        %v981 = vld [vmem:[#allocation3 + $0xb8] sm:$0xff]
        %v982 = vld [vmem:[%s2] sm:$0xff]
        %984 = vset.pattern.permute.xlu0 0
        %985 = vperm.xlu0 %984, %v982
        %v986 = vpop.permute.xlu0 %985
        %vm988 = vcmask 785408
        %v990 = vsel %vm988, %v957, 0
        %992 = vmatprep.subr.mxu0 %v959
        %993 = vmatpush1.msra.mxu0 %v958
        %994 = vmatprep.subr.mxu0 %v961
        %995 = vmatpush1.msra.mxu0 %v960
        %996 = vmatprep.subr.mxu0 %v963
        %997 = vmatpush1.msra.mxu0 %v962
        %998 = vmatprep.subr.mxu0 %v965
        %999 = vmatpush1.msra.mxu0 %v964
        %1000 = vmatprep.subr.mxu0 %v967
        %1001 = vmatpush1.msra.mxu0 %v966
        %1002 = vmatprep.subr.mxu0 %v969
        %1003 = vmatpush1.msra.mxu0 %v968
        %1004 = vmatprep.subr.mxu0 %v971
        %1005 = vmatpush1.msra.mxu0 %v970
        %1006 = vmatprep.subr.mxu0 %v973
        %1007 = vmatpush1.msra.mxu0 %v972
        %1008 = vmatprep.subr.mxu0 %v975
        %1009 = vmatpush1.msra.mxu0 %v974
        %1010 = vmatprep.subr.mxu0 %v977
        %1011 = vmatpush1.msra.mxu0 %v976
        %1012 = vmatprep.subr.mxu0 %v979
        %1013 = vmatpush1.msra.mxu0 %v978
        %1014 = vmatprep.subr.mxu0 %v981
        %1015 = vmatpush1.msra.mxu0 %v980
        %1016 = vmatprep.subr.mxu0 0.0
        %1017 = vmatpush1.msra.mxu0 0.0
        %1018 = vmatprep.subr.mxu0 0.0
        %1019 = vmatpush1.msra.mxu0 0.0
        %1020 = vmatprep.subr.mxu0 0.0
        %1021 = vmatpush1.msra.mxu0 0.0
        %1022 = vmatprep.subr.mxu0 0.0
        %1023 = vmatpush1.msra.mxu0 0.0
        %1024 = vmatprep.subr.mxu0 0.0
        %1025 = vmatpush1.msra.mxu0 0.0
        %1026 = vmatprep.subr.mxu0 0.0
        %1027 = vmatpush1.msra.mxu0 0.0
        %1028 = vmatprep.subr.mxu0 0.0
        %1029 = vmatpush1.msra.mxu0 0.0
        %1030 = vmatprep.subr.mxu0 0.0
        %1031 = vmatpush1.msra.mxu0 0.0
        %1032 = vmatprep.subr.mxu0 0.0
        %1033 = vmatpush1.msra.mxu0 0.0
        %1034 = vmatprep.subr.mxu0 0.0
        %1035 = vmatpush1.msra.mxu0 0.0
        %1036 = vmatprep.subr.mxu0 0.0
        %1037 = vmatpush1.msra.mxu0 0.0
        %1038 = vmatprep.subr.mxu0 0.0
        %1039 = vmatpush1.msra.mxu0 0.0
        %1040 = vmatprep.subr.mxu0 0.0
        %1041 = vmatpush1.msra.mxu0 0.0
        %1042 = vmatprep.subr.mxu0 0.0
        %1043 = vmatpush1.msra.mxu0 0.0
        %1044 = vmatprep.subr.mxu0 0.0
        %1045 = vmatpush1.msra.mxu0 0.0
        %1046 = vmatprep.subr.mxu0 0.0
        %1047 = vmatpush1.msra.mxu0 0.0
        %1048 = vmatprep.subr.mxu0 0.0
        %1049 = vmatpush1.msra.mxu0 0.0
        %1050 = vmatprep.subr.mxu0 0.0
        %1051 = vmatpush1.msra.mxu0 0.0
        %1052 = vmatprep.subr.mxu0 0.0
        %1053 = vmatpush1.msra.mxu0 0.0
        %1054 = vmatprep.subr.mxu0 0.0
        %1055 = vmatpush1.msra.mxu0 0.0
        %1056 = vmatprep.mubr.f32.mxu0 0.0
        %1057 = vmatmul.mubr.f32.gmra.mrb[0].mxu0 %v990
        %v1058 = vpop.f32.mrb[0].mxu0
        %v1059 = vadd.f32 %v986, %v1058
        %v1060 = vpop.f32.mrb[0].mxu0
        %v1061 = vadd.f32 %v986, %v1060
        %1062 = vdwg.mxu0
        %1063 = vst [vmem:[%s186] sm:$0xff] %v1059
        %1064 = vst [vmem:[%s186 + $0x8] sm:$0xff] %v1061
        %s1065 = sand.u32 %s96, 1
        %s1066 = scalar_lea.sflag [#allocation6], %s1065
        %s1067 = sand.u32 %s96, 1
        %s1068 = smul.addr %s1067, 16
        %s1069 = scalar_lea.vmem [#allocation7], %s1068
        // Predicated region
        $region37: #{tpu_custom_call.1} parent=31 // pred_check
          %p1070 = pneg %p106
        $region38: #{tpu_custom_call.1} parent=31 // pred_check_branch
          %1072 = sbr.rel (%p1070) target = $region40
        $region39: #{tpu_custom_call.1} parent=31 // pred_region
          %s1074 = ssub.s32 256, 256
          %1075 = vsyncadd %s1066, %s1074
          %s1076 = smul.addr %s20, 2
          %s1077 = smul.addr %s1076, 128
          %s1078 = scalar_lea.hbm %s3, %s1077
          %s1080 = sshll.u32 %s1069, 4
          %s1081 = int_to_ptr.vmem [resolvable:$true] %s1080
          %1083 = dma.vmem_to_hbm [thread:$0]  %s1081, 256, %s1078, %s1066
        $region40: #{tpu_custom_call.1} parent=31 // pred_fallthru
          _
      $region32: #{tpu_custom_call.1} parent=5 // pred_fallthru
        _
      %p1084 = scmp.le.s32.totalorder 2, %s15
      // Predicated region
      $region41: #{tpu_custom_call.1} parent=5 // pred_check
        %p1085 = pneg %p1084
      $region42: #{tpu_custom_call.1} parent=5 // pred_check_branch
        %1087 = sbr.rel (%p1085) target = $region44
      $region43: #{tpu_custom_call.1} parent=5 // pred_region
        %s1088 = ssub.s32 %s15, 2
        // Predicated region
        $region45: #{tpu_custom_call.1} parent=43 // pred_check
          %p1089 = pneg %p112
        $region46: #{tpu_custom_call.1} parent=43 // pred_check_branch
          %1091 = sbr.rel (%p1089) target = $region48
        $region47: #{tpu_custom_call.1} parent=43 // pred_region
          %s1092 = sand.u32 %s97, 1
          %s1093 = scalar_lea.sflag [#allocation6], %s1092
          %s1094 = sand.u32 %s97, 1
          %s1095 = smul.addr %s1094, 16
          %s1096 = scalar_lea.vmem [#allocation7], %s1095
          %1097 = dma.done %s1093, 256
        $region48: #{tpu_custom_call.1} parent=43 // pred_fallthru
          _
      $region44: #{tpu_custom_call.1} parent=5 // pred_fallthru
        _
    $region6: #{tpu_custom_call.1} parent=1 // loop_footer
      %s19 = sadd.s32 1, %s15
    $region7: #{tpu_custom_call.1} parent=1 // loop_footer_branch
      %14 = sbr.rel target = $region3
    $region8: #{tpu_custom_call.1} parent=1 // loop_exit
      _
    %1098 = vsyncpa [#allocation5], 1
    %s1099 = scalar_lea.sflag [#allocation5], 1
    %1100 = vsyncpa %s1099, 1
    %1101 = vsyncpa [#allocation6], 1
    %s1102 = scalar_lea.sflag [#allocation6], 1
    %1103 = vsyncpa %s1102, 1

</llo_original>
